<compile_context>
chip_gen: v5e
topology: v5e:2x2
jax: 0.10.0
libtpu: 0.0.40
codegen_flags: <defaults>
</compile_context>

<pallas_src>
import functools

import jax
import jax.numpy as jnp
from jax.experimental import pallas as pl
from jax.experimental.pallas import tpu as pltpu


# ----------------------------------------------------------------------------
# Fused kernel: q_attn + c_attn (1x1 convs) + attention + merge + c_proj
# ----------------------------------------------------------------------------
def _fused_cross_attn_kernel(x_ref, enc_ref, mask_ref,
                             qw_ref, qb_ref, cw_ref, cb_ref, pw_ref, pb_ref,
                             out_ref, w_ref, *, num_heads, inv_scale):
    # x_ref   : (1, head_dim, Lq)       enc_ref : (B, 2*head_dim, 2*E)
    # mask_ref: (1, E)
    # qw (E, head_dim)  qb (E, 1)   cw (E, 2*head_dim)  cb (E, 1)
    # pw (head_dim, E)  pb (head_dim, 1)
    # out_ref : (B, head_dim, E)        w_ref   : (E, E)
    f32 = jnp.float32
    bf16 = jnp.bfloat16

    E = qw_ref.shape[0]
    hd = E // num_heads
    B = enc_ref.shape[0]

    # --- q_attn on batch 0; only the first `hd` columns (head 0) feed the scores.
    #     bf16 MXU operands, f32 accumulation; 1/sqrt(hd) folded into q (f32 mul).
    x0 = x_ref[0, :, :hd].astype(bf16)                                # (hd, hd)
    q0 = jnp.dot(qw_ref[...].astype(bf16), x0,
                 preferred_element_type=f32) + qb_ref[...]            # (E, hd) f32
    q0 = (q0 * inv_scale).astype(bf16)

    # --- c_attn: ONE wide matmul over only the columns that are ever read.
    #     RHS = [ enc[0][:, E:] | ... | enc[B-1][:, E:] | enc[0][:, :hd] ]
    #     (values first so value_b slices of the result start at 128-aligned lanes).
    rhs_parts = [enc_ref[b, :, E:].astype(bf16) for b in range(B)]    # each (2hd, E)
    rhs_parts.append(enc_ref[0, :, :hd].astype(bf16))                 # keys, head 0 (2hd, hd)
    rhs = jnp.concatenate(rhs_parts, axis=1)                          # (2hd, B*E + hd)
    kv = jnp.dot(cw_ref[...].astype(bf16), rhs,
                 preferred_element_type=f32) + cb_ref[...]            # (E, B*E + hd) f32
    k0 = kv[:, B * E:].astype(bf16)                                   # (E, hd)

    # --- scores from head-batch 0 only (torch tuple-unpack quirk), mask, f32 softmax.
    #     (dot_general contracting dim 1 of both operands == trans_b matmul; verify in the
    #      lowered bundles that no serialized vxpose of k0 appears on the critical path.)
    scores = jax.lax.dot_general(q0, k0, (((1,), (1,)), ((), ())),
                                 preferred_element_type=f32)          # (E, E)
    scores = scores + mask_ref[...]                                   # broadcast (1,E)->(E,E)
    m = jnp.max(scores, axis=-1, keepdims=True)
    e = jnp.exp(scores - m)
    s = jnp.sum(e, axis=-1, keepdims=True)
    w = e * pl.reciprocal(s, approx=True)                             # softmax(dim=-1), EUP recip
    w_ref[...] = w.astype(w_ref.dtype)
    w_b = w.astype(bf16)

    # --- attention @ V, merge_heads and c_proj, fused:
    #       merged[b] = w @ value[b]     (per-head concat == one full matmul)
    #       out[b]    = c_proj_w @ merged[b] + c_proj_b
    pw = pw_ref[...].astype(bf16)
    for b in range(B):                                                # B is 1 or 2 (static)
        value_b = kv[:, b * E:(b + 1) * E].astype(bf16)               # (E, E)
        merged_b = jnp.dot(w_b, value_b, preferred_element_type=f32)  # (E, E) f32
        out_b = jnp.dot(pw, merged_b.astype(bf16),
                        preferred_element_type=f32) + pb_ref[...]     # (hd, E) f32
        out_ref[b] = out_b.astype(out_ref.dtype)


# ----------------------------------------------------------------------------
# Forward wrapper: a single gridless pallas_call, everything resident in VMEM
# ----------------------------------------------------------------------------
def custom_cross_attention(hidden_states, encoder_hidden_states, encoder_attention_mask,
                           params, num_heads):
    embed_dim = params["q_attn_w"].shape[0]
    head_dim = embed_dim // num_heads
    B = encoder_hidden_states.shape[0]

    assert hidden_states.shape[0] == B
    assert encoder_hidden_states.shape[2] == 2 * embed_dim, \
        "split(split_size, dim=2) must yield exactly (key, value)"
    assert B * num_heads == 2, \
        "torch.matmul tuple-unpack in _attn requires batch*num_heads == 2"
    assert hidden_states.shape[2] == embed_dim, \
        "c_proj Conv1d requires the merged query length to equal embed_dim"

    # Only batch 0's query ever feeds the scores (torch tuple-unpack) -> DMA only that slice.
    x_q = hidden_states[:1]

    kernel = functools.partial(
        _fused_cross_attn_kernel,
        num_heads=num_heads,
        inv_scale=1.0 / (float(head_dim) ** 0.5),
    )
    vmem = lambda: pl.BlockSpec(memory_space=pltpu.MemorySpace.VMEM)

    inputs = (x_q, encoder_hidden_states, encoder_attention_mask,
              params["q_attn_w"], params["q_attn_b"],
              params["c_attn_w"], params["c_attn_b"],
              params["c_proj_w"], params["c_proj_b"])

    E, hd = embed_dim, head_dim
    flops = (2 * E * hd * hd                      # q_attn
             + 2 * E * (2 * hd) * (B * E + hd)    # fused c_attn (only live columns)
             + 2 * E * E * hd                     # QK^T (head-batch 0)
             + B * 2 * E * E * E                  # w @ value
             + B * 2 * hd * E * E)                # c_proj
    out_bytes = (B * hd * E * hidden_states.dtype.itemsize) + (E * E * 4)
    bytes_accessed = sum(int(a.size) * a.dtype.itemsize for a in inputs) + out_bytes

    out, weights = pl.pallas_call(
        kernel,
        out_shape=(
            jax.ShapeDtypeStruct((B, head_dim, embed_dim), hidden_states.dtype),
            jax.ShapeDtypeStruct((embed_dim, embed_dim), jnp.float32),
        ),
        in_specs=[vmem() for _ in range(9)],
        out_specs=(vmem(), vmem()),
        cost_estimate=pl.CostEstimate(flops=flops,
                                      transcendentals=E * E,
                                      bytes_accessed=bytes_accessed),
    )(*inputs)
    return out, weights


# ----------------------------------------------------------------------------
# Pure-JAX reference (literal translation of the torch forward, for sanity check)
# ----------------------------------------------------------------------------
def reference(hidden_states, encoder_hidden_states, mask, params, num_heads):
    E = params["q_attn_w"].shape[0]
    hd = E // num_heads

    def conv(x, w, b):
        return jnp.einsum("oc,bcl->bol", w, x) + b[None, :, :]

    query = conv(hidden_states, params["q_attn_w"], params["q_attn_b"])
    kv = conv(encoder_hidden_states, params["c_attn_w"], params["c_attn_b"])
    key_, value = kv[:, :, :E], kv[:, :, E:]

    def split_heads(t):
        t = t.reshape(t.shape[0], -1, num_heads, hd)
        t = jnp.transpose(t, (0, 2, 1, 3))
        return t.reshape(-1, t.shape[-2], t.shape[-1])

    q, k, v = split_heads(query), split_heads(key_), split_heads(value)
    scores = (q[0] @ k[0].T) / (hd ** 0.5) + mask
    w = jax.nn.softmax(scores, axis=-1)
    ao = jnp.einsum("qk,bkd->bqd", w, v)
    t = ao.reshape(-1, num_heads, ao.shape[1], hd)
    t = jnp.transpose(t, (0, 2, 1, 3))
    t = t.reshape(t.shape[0], -1, num_heads * hd)
    out = conv(t, params["c_proj_w"], params["c_proj_b"])
    return out, w


if __name__ == "__main__":
    hidden_size = 128        # embed_dim (lane-aligned -> dense 128-wide stores)
    num_heads = 2
    head_dim = hidden_size // num_heads
    B = 1                    # B * num_heads == 2 (required by the torch tuple-unpack)
    L_q = hidden_size        # required by c_proj's Conv1d channel check
    L_enc = 2 * hidden_size  # required so split(dim=2) gives exactly (key, value)

    root = jax.random.PRNGKey(0)
    ks = jax.random.split(root, 9)
    params = {
        "q_attn_w": 0.1 * jax.random.normal(ks[0], (hidden_size, head_dim), jnp.float32),
        "q_attn_b": 0.1 * jax.random.normal(ks[1], (hidden_size, 1), jnp.float32),
        "c_attn_w": 0.1 * jax.random.normal(ks[2], (hidden_size, 2 * head_dim), jnp.float32),
        "c_attn_b": 0.1 * jax.random.normal(ks[3], (hidden_size, 1), jnp.float32),
        "c_proj_w": 0.1 * jax.random.normal(ks[4], (head_dim, hidden_size), jnp.float32),
        "c_proj_b": 0.1 * jax.random.normal(ks[5], (head_dim, 1), jnp.float32),
    }

    hidden_states = jax.random.normal(ks[6], (B, head_dim, L_q), jnp.float32)
    encoder_hidden_states = jax.random.normal(ks[7], (B, 2 * head_dim, L_enc), jnp.float32)
    encoder_attention_mask = jnp.where(
        jax.random.uniform(ks[8], (1, hidden_size)) > 0.2, 0.0, -1e4
    ).astype(jnp.float32)

    out, weights = custom_cross_attention(
        hidden_states, encoder_hidden_states, encoder_attention_mask, params, num_heads
    )
    jax.block_until_ready((out, weights))

    ref_out, ref_w = reference(
        hidden_states, encoder_hidden_states, encoder_attention_mask, params, num_heads
    )
    assert out.shape == (B, head_dim, hidden_size)
    assert weights.shape == (L_q, hidden_size)
    # bf16 MXU operands (f32 accumulation) + EUP approx reciprocal -> ~0.5-1% relative error
    # vs. the f32 reference; 2e-2 tolerance still catches any structural mistake.
    assert jnp.allclose(weights, ref_w, atol=1e-2, rtol=1e-2)
    assert jnp.allclose(out, ref_out, atol=2e-2, rtol=2e-2)

    print("KERNEL_OK")
</pallas_src>

<mosaic_0001>
module attributes {stable_mosaic.version = 11 : i64} {
  func.func @_fused_cross_attn_kernel(%arg0: memref<1x64x128xf32, #tpu.memory_space<vmem>>, %arg1: memref<1x128x256xf32, #tpu.memory_space<vmem>>, %arg2: memref<1x128xf32, #tpu.memory_space<vmem>>, %arg3: memref<128x64xf32, #tpu.memory_space<vmem>>, %arg4: memref<128x1xf32, #tpu.memory_space<vmem>>, %arg5: memref<128x128xf32, #tpu.memory_space<vmem>>, %arg6: memref<128x1xf32, #tpu.memory_space<vmem>>, %arg7: memref<64x128xf32, #tpu.memory_space<vmem>>, %arg8: memref<64x1xf32, #tpu.memory_space<vmem>>, %arg9: memref<1x64x128xf32, #tpu.memory_space<vmem>>, %arg10: memref<128x128xf32, #tpu.memory_space<vmem>>) attributes {dimension_semantics = [], scalar_prefetch = 0 : i64, scratch_operands = 0 : i64, tpu.core_type = #tpu.core_type<tc>} {
    %c0 = arith.constant 0 : index
    %c0_0 = arith.constant 0 : index
    %c0_1 = arith.constant 0 : index
    %0 = vector.load %arg0[%c0, %c0_0, %c0_1] : memref<1x64x128xf32, #tpu.memory_space<vmem>>, vector<1x64x64xf32>
    %1 = vector.shape_cast %0 : vector<1x64x64xf32> to vector<64x64xf32>
    %2 = arith.truncf %1 : vector<64x64xf32> to vector<64x64xbf16>
    %c0_2 = arith.constant 0 : index
    %c0_3 = arith.constant 0 : index
    %3 = vector.load %arg3[%c0_2, %c0_3] : memref<128x64xf32, #tpu.memory_space<vmem>>, vector<128x64xf32>
    %4 = arith.truncf %3 : vector<128x64xf32> to vector<128x64xbf16>
    %cst = arith.constant dense<0.000000e+00> : vector<128x64xf32>
    %5 = tpu.matmul %4, %2, %cst {dimension_numbers = #tpu.dot_dimension_numbers<[1], [0], [0], [1], [0, 0, 1, 1], [], []>} : vector<128x64xbf16>, vector<64x64xbf16>, vector<128x64xf32> -> vector<128x64xf32>
    %c0_4 = arith.constant 0 : index
    %c0_5 = arith.constant 0 : index
    %6 = vector.load %arg4[%c0_4, %c0_5] : memref<128x1xf32, #tpu.memory_space<vmem>>, vector<128x1xf32>
    %7 = vector.broadcast %6 : vector<128x1xf32> to vector<128x64xf32>
    %8 = arith.addf %5, %7 : vector<128x64xf32>
    %cst_6 = arith.constant 1.250000e-01 : f32
    %9 = vector.broadcast %cst_6 : f32 to vector<128x64xf32>
    %10 = arith.mulf %8, %9 : vector<128x64xf32>
    %11 = arith.truncf %10 : vector<128x64xf32> to vector<128x64xbf16>
    %c0_7 = arith.constant 0 : index
    %c0_8 = arith.constant 0 : index
    %c128 = arith.constant 128 : index
    %12 = vector.load %arg1[%c0_7, %c0_8, %c128] : memref<1x128x256xf32, #tpu.memory_space<vmem>>, vector<1x128x128xf32>
    %13 = vector.shape_cast %12 : vector<1x128x128xf32> to vector<128x128xf32>
    %14 = arith.truncf %13 : vector<128x128xf32> to vector<128x128xbf16>
    %c0_9 = arith.constant 0 : index
    %c0_10 = arith.constant 0 : index
    %c0_11 = arith.constant 0 : index
    %15 = vector.load %arg1[%c0_9, %c0_10, %c0_11] : memref<1x128x256xf32, #tpu.memory_space<vmem>>, vector<1x128x64xf32>
    %16 = vector.shape_cast %15 : vector<1x128x64xf32> to vector<128x64xf32>
    %17 = arith.truncf %16 : vector<128x64xf32> to vector<128x64xbf16>
    %18 = tpu.concatenate %14, %17 in 1 : vector<128x128xbf16>, vector<128x64xbf16> -> vector<128x192xbf16>
    %c0_12 = arith.constant 0 : index
    %c0_13 = arith.constant 0 : index
    %19 = vector.load %arg5[%c0_12, %c0_13] : memref<128x128xf32, #tpu.memory_space<vmem>>, vector<128x128xf32>
    %20 = arith.truncf %19 : vector<128x128xf32> to vector<128x128xbf16>
    %cst_14 = arith.constant dense<0.000000e+00> : vector<128x192xf32>
    %21 = tpu.matmul %20, %18, %cst_14 {dimension_numbers = #tpu.dot_dimension_numbers<[1], [0], [0], [1], [0, 0, 1, 1], [], []>} : vector<128x128xbf16>, vector<128x192xbf16>, vector<128x192xf32> -> vector<128x192xf32>
    %c0_15 = arith.constant 0 : index
    %c0_16 = arith.constant 0 : index
    %22 = vector.load %arg6[%c0_15, %c0_16] : memref<128x1xf32, #tpu.memory_space<vmem>>, vector<128x1xf32>
    %23 = vector.broadcast %22 : vector<128x1xf32> to vector<128x192xf32>
    %24 = arith.addf %21, %23 : vector<128x192xf32>
    %25 = vector.extract_strided_slice %24 {offsets = [0, 128], sizes = [128, 64], strides = [1, 1]} : vector<128x192xf32> to vector<128x64xf32>
    %26 = arith.truncf %25 : vector<128x64xf32> to vector<128x64xbf16>
    %cst_17 = arith.constant dense<0.000000e+00> : vector<128x128xf32>
    %27 = tpu.matmul %11, %26, %cst_17 {dimension_numbers = #tpu.dot_dimension_numbers<[1], [1], [0], [0], [0, 0, 1, 0], [], []>} : vector<128x64xbf16>, vector<128x64xbf16>, vector<128x128xf32> -> vector<128x128xf32>
    %c0_18 = arith.constant 0 : index
    %c0_19 = arith.constant 0 : index
    %28 = vector.load %arg2[%c0_18, %c0_19] : memref<1x128xf32, #tpu.memory_space<vmem>>, vector<1x128xf32>
    %29 = vector.broadcast %28 : vector<1x128xf32> to vector<128x128xf32>
    %30 = arith.addf %27, %29 : vector<128x128xf32>
    %cst_20 = arith.constant dense<0xFF800000> : vector<128xf32>
    %31 = vector.multi_reduction <maximumf>, %30, %cst_20 [1] : vector<128x128xf32> to vector<128xf32>
    %32 = vector.shape_cast %31 : vector<128xf32> to vector<128x1xf32>
    %33 = vector.broadcast %32 : vector<128x1xf32> to vector<128x128xf32>
    %34 = arith.subf %30, %33 : vector<128x128xf32>
    %35 = math.exp %34 : vector<128x128xf32>
    %cst_21 = arith.constant dense<0.000000e+00> : vector<128xf32>
    %36 = vector.multi_reduction <add>, %35, %cst_21 [1] : vector<128x128xf32> to vector<128xf32>
    %37 = vector.shape_cast %36 : vector<128xf32> to vector<128x1xf32>
    %38 = tpu.reciprocal %37 {approx = true} : vector<128x1xf32> -> vector<128x1xf32>
    %39 = vector.broadcast %38 : vector<128x1xf32> to vector<128x128xf32>
    %40 = arith.mulf %35, %39 : vector<128x128xf32>
    %c0_22 = arith.constant 0 : index
    %c0_23 = arith.constant 0 : index
    %41 = vector.load %arg10[%c0_22, %c0_23] : memref<128x128xf32, #tpu.memory_space<vmem>>, vector<128x128xf32>
    tpu.vector_store %arg10[%c0_22, %c0_23], %40 {strides = array<i32>} : memref<128x128xf32, #tpu.memory_space<vmem>>, vector<128x128xf32>,
    %42 = arith.truncf %40 : vector<128x128xf32> to vector<128x128xbf16>
    %c0_24 = arith.constant 0 : index
    %c0_25 = arith.constant 0 : index
    %43 = vector.load %arg7[%c0_24, %c0_25] : memref<64x128xf32, #tpu.memory_space<vmem>>, vector<64x128xf32>
    %44 = arith.truncf %43 : vector<64x128xf32> to vector<64x128xbf16>
    %45 = vector.extract_strided_slice %24 {offsets = [0, 0], sizes = [128, 128], strides = [1, 1]} : vector<128x192xf32> to vector<128x128xf32>
    %46 = arith.truncf %45 : vector<128x128xf32> to vector<128x128xbf16>
    %cst_26 = arith.constant dense<0.000000e+00> : vector<128x128xf32>
    %47 = tpu.matmul %42, %46, %cst_26 {dimension_numbers = #tpu.dot_dimension_numbers<[1], [0], [0], [1], [0, 0, 1, 1], [], []>} : vector<128x128xbf16>, vector<128x128xbf16>, vector<128x128xf32> -> vector<128x128xf32>
    %48 = arith.truncf %47 : vector<128x128xf32> to vector<128x128xbf16>
    %cst_27 = arith.constant dense<0.000000e+00> : vector<64x128xf32>
    %49 = tpu.matmul %44, %48, %cst_27 {dimension_numbers = #tpu.dot_dimension_numbers<[1], [0], [0], [1], [0, 0, 1, 1], [], []>} : vector<64x128xbf16>, vector<128x128xbf16>, vector<64x128xf32> -> vector<64x128xf32>
    %c0_28 = arith.constant 0 : index
    %c0_29 = arith.constant 0 : index
    %50 = vector.load %arg8[%c0_28, %c0_29] : memref<64x1xf32, #tpu.memory_space<vmem>>, vector<64x1xf32>
    %51 = vector.broadcast %50 : vector<64x1xf32> to vector<64x128xf32>
    %52 = arith.addf %49, %51 : vector<64x128xf32>
    %c0_30 = arith.constant 0 : index
    %c0_31 = arith.constant 0 : index
    %c0_32 = arith.constant 0 : index
    %53 = vector.load %arg9[%c0_30, %c0_31, %c0_32] : memref<1x64x128xf32, #tpu.memory_space<vmem>>, vector<1x64x128xf32>
    %54 = vector.shape_cast %53 : vector<1x64x128xf32> to vector<64x128xf32>
    %55 = vector.shape_cast %52 : vector<64x128xf32> to vector<1x64x128xf32>
    tpu.vector_store %arg9[%c0_30, %c0_31, %c0_32], %55 {strides = array<i32>} : memref<1x64x128xf32, #tpu.memory_space<vmem>>, vector<1x64x128xf32>,
    return
  }
}

</mosaic_0001>

<llo_original>
// kernel: tpu_custom_call.1
$region0: #{tpu_custom_call.1}
  #allocation0 [shape = 'u32[]', space=smem, size = 0x4, offset = 0x4, fixed_abs, tag = 'smem constant byte address 0x4 - core index']
  #allocation1 [shape = 'u32[72,128]{1,0:T(1,128)}', space=vmem, size = 0x9000, scoped, tag = 'internal scratch']
  %s0 = inlined_call_operand.vmem [shape: f32[1,64,128], index: 0, kind: input, shape index: {}]
  %s1 = inlined_call_operand.vmem [shape: f32[1,128,256], index: 1, kind: input, shape index: {}]
  %s2 = inlined_call_operand.vmem [shape: f32[1,128], index: 2, kind: input, shape index: {}]
  %s3 = inlined_call_operand.vmem [shape: f32[128,64], index: 3, kind: input, shape index: {}]
  %s4 = inlined_call_operand.vmem [shape: f32[128,1], index: 4, kind: input, shape index: {}]
  %s5 = inlined_call_operand.vmem [shape: f32[128,128], index: 5, kind: input, shape index: {}]
  %s6 = inlined_call_operand.vmem [shape: f32[128,1], index: 6, kind: input, shape index: {}]
  %s7 = inlined_call_operand.vmem [shape: f32[64,128], index: 7, kind: input, shape index: {}]
  %s8 = inlined_call_operand.vmem [shape: f32[64,1], index: 8, kind: input, shape index: {}]
  %s9 = inlined_call_operand.hbm [shape: f32[1,64,128], index: 9, kind: output, shape index: {0}]
  %s10 = inlined_call_operand.hbm [shape: f32[128,128], index: 10, kind: output, shape index: {1}]
  %11 = xla_tuple %s9, %s10
  %s12 = sld [smem:[#allocation0]]
  $region54: #{tpu_custom_call.1} parent=0
    _
  %s14 = ssub.s32 1, %s12
  %s15 = scalar_select 0, %s14, %s12
  $region1: #{tpu_custom_call.1} parent=0
    #allocation2 [shape = 'u8[32768]{0}', space=vmem, size = 0x8000, scoped, tag = 'output window, operand 0, single buffered']
    #allocation3 [shape = 's32[1]{0}', space=sflag, size = 0x4, scoped, tag = 'scoped memory for tpu_custom_call.1']
    #allocation4 [shape = 'u8[65536]{0}', space=vmem, size = 0x10000, scoped, tag = 'output window, operand 1, single buffered']
    #allocation5 [shape = 's32[1]{0}', space=sflag, size = 0x4, scoped, tag = 'scoped memory for tpu_custom_call.1']
    %16 = vsyncpa [#allocation3], 0
    %17 = vsyncpa [#allocation5], 0
    // Predicated region
    $region2: #{tpu_custom_call.1} parent=1 // pred_check
      _
    $region3: #{tpu_custom_call.1} parent=1 // pred_check_branch
      %19 = sbr.rel (0) target = $region5
    $region4: #{tpu_custom_call.1} parent=1 // pred_region
      _
    $region5: #{tpu_custom_call.1} parent=1 // pred_fallthru
      _
    // Predicated region
    $region6: #{tpu_custom_call.1} parent=1 // pred_check
      _
    $region7: #{tpu_custom_call.1} parent=1 // pred_check_branch
      %21 = sbr.rel (0) target = $region9
    $region8: #{tpu_custom_call.1} parent=1 // pred_region
      _
    $region9: #{tpu_custom_call.1} parent=1 // pred_fallthru
      _
    // Predicated region
    $region10: #{tpu_custom_call.1} parent=1 // pred_check
      _
    $region11: #{tpu_custom_call.1} parent=1 // pred_check_branch
      %23 = sbr.rel (0) target = $region13
    $region12: #{tpu_custom_call.1} parent=1 // pred_region
      _
    $region13: #{tpu_custom_call.1} parent=1 // pred_fallthru
      _
    // Predicated region
    $region14: #{tpu_custom_call.1} parent=1 // pred_check
      _
    $region15: #{tpu_custom_call.1} parent=1 // pred_check_branch
      %25 = sbr.rel (0) target = $region17
    $region16: #{tpu_custom_call.1} parent=1 // pred_region
      _
    $region17: #{tpu_custom_call.1} parent=1 // pred_fallthru
      _
    // Predicated region
    $region18: #{tpu_custom_call.1} parent=1 // pred_check
      _
    $region19: #{tpu_custom_call.1} parent=1 // pred_check_branch
      %27 = sbr.rel (0) target = $region21
    $region20: #{tpu_custom_call.1} parent=1 // pred_region
      _
    $region21: #{tpu_custom_call.1} parent=1 // pred_fallthru
      _
    // Predicated region
    $region22: #{tpu_custom_call.1} parent=1 // pred_check
      _
    $region23: #{tpu_custom_call.1} parent=1 // pred_check_branch
      %29 = sbr.rel (0) target = $region25
    $region24: #{tpu_custom_call.1} parent=1 // pred_region
      _
    $region25: #{tpu_custom_call.1} parent=1 // pred_fallthru
      _
    // Predicated region
    $region26: #{tpu_custom_call.1} parent=1 // pred_check
      _
    $region27: #{tpu_custom_call.1} parent=1 // pred_check_branch
      %31 = sbr.rel (0) target = $region29
    $region28: #{tpu_custom_call.1} parent=1 // pred_region
      _
    $region29: #{tpu_custom_call.1} parent=1 // pred_fallthru
      _
    // Predicated region
    $region30: #{tpu_custom_call.1} parent=1 // pred_check
      _
    $region31: #{tpu_custom_call.1} parent=1 // pred_check_branch
      %33 = sbr.rel (0) target = $region33
    $region32: #{tpu_custom_call.1} parent=1 // pred_region
      _
    $region33: #{tpu_custom_call.1} parent=1 // pred_fallthru
      _
    // Predicated region
    $region34: #{tpu_custom_call.1} parent=1 // pred_check
      _
    $region35: #{tpu_custom_call.1} parent=1 // pred_check_branch
      %35 = sbr.rel (0) target = $region37
    $region36: #{tpu_custom_call.1} parent=1 // pred_region
      _
    $region37: #{tpu_custom_call.1} parent=1 // pred_fallthru
      _
    %v37 = vld [vmem:[%s0] sm:$0xff]
    %v38 = vld [vmem:[%s0 + $0x8] sm:$0xff]
    %v39 = vld [vmem:[%s0 + $0x10] sm:$0xff]
    %v40 = vld [vmem:[%s0 + $0x18] sm:$0xff]
    %v41 = vld [vmem:[%s0 + $0x20] sm:$0xff]
    %v42 = vld [vmem:[%s0 + $0x28] sm:$0xff]
    %v43 = vld [vmem:[%s0 + $0x30] sm:$0xff]
    %v44 = vld [vmem:[%s0 + $0x38] sm:$0xff]
    %v45 = vpack.c.bf16 %v38, %v37
    %v46 = vpack.c.bf16 %v40, %v39
    %v47 = vpack.c.bf16 %v42, %v41
    %v48 = vpack.c.bf16 %v44, %v43
    %v49 = vld [vmem:[%s3] sm:$0xff]
    %v50 = vld [vmem:[%s3 + $0x8] sm:$0xff]
    %v51 = vld [vmem:[%s3 + $0x10] sm:$0xff]
    %v52 = vld [vmem:[%s3 + $0x18] sm:$0xff]
    %v53 = vld [vmem:[%s3 + $0x20] sm:$0xff]
    %v54 = vld [vmem:[%s3 + $0x28] sm:$0xff]
    %v55 = vld [vmem:[%s3 + $0x30] sm:$0xff]
    %v56 = vld [vmem:[%s3 + $0x38] sm:$0xff]
    %v57 = vld [vmem:[%s3 + $0x40] sm:$0xff]
    %v58 = vld [vmem:[%s3 + $0x48] sm:$0xff]
    %v59 = vld [vmem:[%s3 + $0x50] sm:$0xff]
    %v60 = vld [vmem:[%s3 + $0x58] sm:$0xff]
    %v61 = vld [vmem:[%s3 + $0x60] sm:$0xff]
    %v62 = vld [vmem:[%s3 + $0x68] sm:$0xff]
    %v63 = vld [vmem:[%s3 + $0x70] sm:$0xff]
    %v64 = vld [vmem:[%s3 + $0x78] sm:$0xff]
    %v65 = vpack.c.bf16 %v50, %v49
    %v66 = vpack.c.bf16 %v52, %v51
    %v67 = vpack.c.bf16 %v54, %v53
    %v68 = vpack.c.bf16 %v56, %v55
    %v69 = vpack.c.bf16 %v58, %v57
    %v70 = vpack.c.bf16 %v60, %v59
    %v71 = vpack.c.bf16 %v62, %v61
    %v72 = vpack.c.bf16 %v64, %v63
    %v73 = vld [vmem:[%s4] sm:$0xff]
    %v74 = vld [vmem:[%s4 + $0x8] sm:$0xff]
    %v75 = vld [vmem:[%s4 + $0x10] sm:$0xff]
    %v76 = vld [vmem:[%s4 + $0x18] sm:$0xff]
    %v77 = vld [vmem:[%s4 + $0x20] sm:$0xff]
    %v78 = vld [vmem:[%s4 + $0x28] sm:$0xff]
    %v79 = vld [vmem:[%s4 + $0x30] sm:$0xff]
    %v80 = vld [vmem:[%s4 + $0x38] sm:$0xff]
    %v81 = vld [vmem:[%s4 + $0x40] sm:$0xff]
    %v82 = vld [vmem:[%s4 + $0x48] sm:$0xff]
    %v83 = vld [vmem:[%s4 + $0x50] sm:$0xff]
    %v84 = vld [vmem:[%s4 + $0x58] sm:$0xff]
    %v85 = vld [vmem:[%s4 + $0x60] sm:$0xff]
    %v86 = vld [vmem:[%s4 + $0x68] sm:$0xff]
    %v87 = vld [vmem:[%s4 + $0x70] sm:$0xff]
    %v88 = vld [vmem:[%s4 + $0x78] sm:$0xff]
    %90 = vset.pattern.permute.xlu0 0
    %91 = vperm.xlu0 %90, %v73
    %v92 = vpop.permute.xlu0 %91
    %95 = vset.pattern.permute.xlu0 0
    %96 = vperm.xlu0 %95, %v74
    %v97 = vpop.permute.xlu0 %96
    %100 = vset.pattern.permute.xlu0 0
    %101 = vperm.xlu0 %100, %v75
    %v102 = vpop.permute.xlu0 %101
    %105 = vset.pattern.permute.xlu0 0
    %106 = vperm.xlu0 %105, %v76
    %v107 = vpop.permute.xlu0 %106
    %110 = vset.pattern.permute.xlu0 0
    %111 = vperm.xlu0 %110, %v77
    %v112 = vpop.permute.xlu0 %111
    %115 = vset.pattern.permute.xlu0 0
    %116 = vperm.xlu0 %115, %v78
    %v117 = vpop.permute.xlu0 %116
    %120 = vset.pattern.permute.xlu0 0
    %121 = vperm.xlu0 %120, %v79
    %v122 = vpop.permute.xlu0 %121
    %125 = vset.pattern.permute.xlu0 0
    %126 = vperm.xlu0 %125, %v80
    %v127 = vpop.permute.xlu0 %126
    %130 = vset.pattern.permute.xlu0 0
    %131 = vperm.xlu0 %130, %v81
    %v132 = vpop.permute.xlu0 %131
    %135 = vset.pattern.permute.xlu0 0
    %136 = vperm.xlu0 %135, %v82
    %v137 = vpop.permute.xlu0 %136
    %140 = vset.pattern.permute.xlu0 0
    %141 = vperm.xlu0 %140, %v83
    %v142 = vpop.permute.xlu0 %141
    %145 = vset.pattern.permute.xlu0 0
    %146 = vperm.xlu0 %145, %v84
    %v147 = vpop.permute.xlu0 %146
    %150 = vset.pattern.permute.xlu0 0
    %151 = vperm.xlu0 %150, %v85
    %v152 = vpop.permute.xlu0 %151
    %155 = vset.pattern.permute.xlu0 0
    %156 = vperm.xlu0 %155, %v86
    %v157 = vpop.permute.xlu0 %156
    %160 = vset.pattern.permute.xlu0 0
    %161 = vperm.xlu0 %160, %v87
    %v162 = vpop.permute.xlu0 %161
    %165 = vset.pattern.permute.xlu0 0
    %166 = vperm.xlu0 %165, %v88
    %v167 = vpop.permute.xlu0 %166
    %vm169 = vcmask 523264
    %v171 = vsel %vm169, %v65, 0
    %v174 = vsel %vm169, %v66, 0
    %v177 = vsel %vm169, %v67, 0
    %v180 = vsel %vm169, %v68, 0
    %v183 = vsel %vm169, %v69, 0
    %v186 = vsel %vm169, %v70, 0
    %v189 = vsel %vm169, %v71, 0
    %v192 = vsel %vm169, %v72, 0
    %194 = vmatpush.bf16.msra.mxu0 0
    %195 = vmatpush.bf16.msra.mxu0 0
    %196 = vmatpush.bf16.msra.mxu0 0
    %197 = vmatpush.bf16.msra.mxu0 0
    %198 = vmatpush.bf16.msra.mxu0 %v48
    %199 = vmatpush.bf16.msra.mxu0 %v47
    %200 = vmatpush.bf16.msra.mxu0 %v46
    %201 = vmatpush.bf16.msra.mxu0 %v45
    %202 = vmatmul.bf16.gmra.mxu0 %v171
    %v203 = vpop.f32.mrf.mxu0
    %v204 = vadd.f32 %v92, %v203
    %v205 = vpop.f32.mrf.mxu0
    %v206 = vadd.f32 %v97, %v205
    %207 = vmatmul.bf16.gmra.mxu0 %v174
    %v208 = vpop.f32.mrf.mxu0
    %v209 = vadd.f32 %v102, %v208
    %v210 = vpop.f32.mrf.mxu0
    %v211 = vadd.f32 %v107, %v210
    %212 = vmatmul.bf16.gmra.mxu0 %v177
    %v213 = vpop.f32.mrf.mxu0
    %v214 = vadd.f32 %v112, %v213
    %v215 = vpop.f32.mrf.mxu0
    %v216 = vadd.f32 %v117, %v215
    %217 = vmatmul.bf16.gmra.mxu0 %v180
    %v218 = vpop.f32.mrf.mxu0
    %v219 = vadd.f32 %v122, %v218
    %v220 = vpop.f32.mrf.mxu0
    %v221 = vadd.f32 %v127, %v220
    %222 = vmatmul.bf16.gmra.mxu0 %v183
    %v223 = vpop.f32.mrf.mxu0
    %v224 = vadd.f32 %v132, %v223
    %v225 = vpop.f32.mrf.mxu0
    %v226 = vadd.f32 %v137, %v225
    %227 = vmatmul.bf16.gmra.mxu0 %v186
    %v228 = vpop.f32.mrf.mxu0
    %v229 = vadd.f32 %v142, %v228
    %v230 = vpop.f32.mrf.mxu0
    %v231 = vadd.f32 %v147, %v230
    %232 = vmatmul.bf16.gmra.mxu0 %v189
    %v233 = vpop.f32.mrf.mxu0
    %v234 = vadd.f32 %v152, %v233
    %v235 = vpop.f32.mrf.mxu0
    %v236 = vadd.f32 %v157, %v235
    %237 = vmatmul.bf16.gmra.mxu0 %v192
    %v238 = vpop.f32.mrf.mxu0
    %v239 = vadd.f32 %v162, %v238
    %v240 = vpop.f32.mrf.mxu0
    %v241 = vadd.f32 %v167, %v240
    %242 = vdwg.mxu0
    %v243 = vmul.f32 %v204, 0.125
    %v244 = vmul.f32 %v206, 0.125
    %v245 = vmul.f32 %v209, 0.125
    %v246 = vmul.f32 %v211, 0.125
    %v247 = vmul.f32 %v214, 0.125
    %v248 = vmul.f32 %v216, 0.125
    %v249 = vmul.f32 %v219, 0.125
    %v250 = vmul.f32 %v221, 0.125
    %v251 = vmul.f32 %v224, 0.125
    %v252 = vmul.f32 %v226, 0.125
    %v253 = vmul.f32 %v229, 0.125
    %v254 = vmul.f32 %v231, 0.125
    %v255 = vmul.f32 %v234, 0.125
    %v256 = vmul.f32 %v236, 0.125
    %v257 = vmul.f32 %v239, 0.125
    %v258 = vmul.f32 %v241, 0.125
    %v259 = vpack.c.bf16 %v244, %v243
    %v260 = vpack.c.bf16 %v246, %v245
    %v261 = vpack.c.bf16 %v248, %v247
    %v262 = vpack.c.bf16 %v250, %v249
    %v263 = vpack.c.bf16 %v252, %v251
    %v264 = vpack.c.bf16 %v254, %v253
    %v265 = vpack.c.bf16 %v256, %v255
    %v266 = vpack.c.bf16 %v258, %v257
    %v267 = vld [vmem:[%s1 + $0x8] sm:$0xff]
    %v268 = vld [vmem:[%s1 + $0x18] sm:$0xff]
    %v269 = vld [vmem:[%s1 + $0x28] sm:$0xff]
    %v270 = vld [vmem:[%s1 + $0x38] sm:$0xff]
    %v271 = vld [vmem:[%s1 + $0x48] sm:$0xff]
    %v272 = vld [vmem:[%s1 + $0x58] sm:$0xff]
    %v273 = vld [vmem:[%s1 + $0x68] sm:$0xff]
    %v274 = vld [vmem:[%s1 + $0x78] sm:$0xff]
    %v275 = vld [vmem:[%s1 + $0x88] sm:$0xff]
    %v276 = vld [vmem:[%s1 + $0x98] sm:$0xff]
    %v277 = vld [vmem:[%s1 + $0xa8] sm:$0xff]
    %v278 = vld [vmem:[%s1 + $0xb8] sm:$0xff]
    %v279 = vld [vmem:[%s1 + $0xc8] sm:$0xff]
    %v280 = vld [vmem:[%s1 + $0xd8] sm:$0xff]
    %v281 = vld [vmem:[%s1 + $0xe8] sm:$0xff]
    %v282 = vld [vmem:[%s1 + $0xf8] sm:$0xff]
    %v283 = vpack.c.bf16 %v267, %v267
    %v284 = vpack.c.bf16 %v268, %v268
    %v285 = vpack.c.bf16 %v269, %v269
    %v286 = vpack.c.bf16 %v270, %v270
    %v287 = vpack.c.bf16 %v271, %v271
    %v288 = vpack.c.bf16 %v272, %v272
    %v289 = vpack.c.bf16 %v273, %v273
    %v290 = vpack.c.bf16 %v274, %v274
    %v291 = vpack.c.bf16 %v275, %v275
    %v292 = vpack.c.bf16 %v276, %v276
    %v293 = vpack.c.bf16 %v277, %v277
    %v294 = vpack.c.bf16 %v278, %v278
    %v295 = vpack.c.bf16 %v279, %v279
    %v296 = vpack.c.bf16 %v280, %v280
    %v297 = vpack.c.bf16 %v281, %v281
    %v298 = vpack.c.bf16 %v282, %v282
    %v299 = vld [vmem:[%s1] sm:$0xff]
    %v300 = vld [vmem:[%s1 + $0x10] sm:$0xff]
    %v301 = vld [vmem:[%s1 + $0x20] sm:$0xff]
    %v302 = vld [vmem:[%s1 + $0x30] sm:$0xff]
    %v303 = vld [vmem:[%s1 + $0x40] sm:$0xff]
    %v304 = vld [vmem:[%s1 + $0x50] sm:$0xff]
    %v305 = vld [vmem:[%s1 + $0x60] sm:$0xff]
    %v306 = vld [vmem:[%s1 + $0x70] sm:$0xff]
    %v307 = vld [vmem:[%s1 + $0x80] sm:$0xff]
    %v308 = vld [vmem:[%s1 + $0x90] sm:$0xff]
    %v309 = vld [vmem:[%s1 + $0xa0] sm:$0xff]
    %v310 = vld [vmem:[%s1 + $0xb0] sm:$0xff]
    %v311 = vld [vmem:[%s1 + $0xc0] sm:$0xff]
    %v312 = vld [vmem:[%s1 + $0xd0] sm:$0xff]
    %v313 = vld [vmem:[%s1 + $0xe0] sm:$0xff]
    %v314 = vld [vmem:[%s1 + $0xf0] sm:$0xff]
    %v315 = vpack.c.bf16 %v299, %v299
    %v316 = vpack.c.bf16 %v300, %v300
    %v317 = vpack.c.bf16 %v301, %v301
    %v318 = vpack.c.bf16 %v302, %v302
    %v319 = vpack.c.bf16 %v303, %v303
    %v320 = vpack.c.bf16 %v304, %v304
    %v321 = vpack.c.bf16 %v305, %v305
    %v322 = vpack.c.bf16 %v306, %v306
    %v323 = vpack.c.bf16 %v307, %v307
    %v324 = vpack.c.bf16 %v308, %v308
    %v325 = vpack.c.bf16 %v309, %v309
    %v326 = vpack.c.bf16 %v310, %v310
    %v327 = vpack.c.bf16 %v311, %v311
    %v328 = vpack.c.bf16 %v312, %v312
    %v329 = vpack.c.bf16 %v313, %v313
    %v330 = vpack.c.bf16 %v314, %v314
    %v347 = vunpack.c.l.b16 %v283
    %v348 = vunpack.c.l.b16 %v284
    %v349 = vunpack.c.l.b16 %v285
    %v350 = vunpack.c.l.b16 %v286
    %v351 = vunpack.c.l.b16 %v287
    %v352 = vunpack.c.l.b16 %v288
    %v353 = vunpack.c.l.b16 %v289
    %v354 = vunpack.c.l.b16 %v290
    %v355 = vunpack.c.l.b16 %v291
    %v356 = vunpack.c.l.b16 %v292
    %v357 = vunpack.c.l.b16 %v293
    %v358 = vunpack.c.l.b16 %v294
    %v359 = vunpack.c.l.b16 %v295
    %v360 = vunpack.c.l.b16 %v296
    %v361 = vunpack.c.l.b16 %v297
    %v362 = vunpack.c.l.b16 %v298
    %v363 = vpack.c.b16 %v348, %v347
    %v364 = vpack.c.b16 %v350, %v349
    %v365 = vpack.c.b16 %v352, %v351
    %v366 = vpack.c.b16 %v354, %v353
    %v367 = vpack.c.b16 %v356, %v355
    %v368 = vpack.c.b16 %v358, %v357
    %v369 = vpack.c.b16 %v360, %v359
    %v370 = vpack.c.b16 %v362, %v361
    %v395 = vunpack.c.l.b16 %v315
    %v396 = vunpack.c.l.b16 %v316
    %v397 = vunpack.c.l.b16 %v317
    %v398 = vunpack.c.l.b16 %v318
    %v399 = vunpack.c.l.b16 %v319
    %v400 = vunpack.c.l.b16 %v320
    %v401 = vunpack.c.l.b16 %v321
    %v402 = vunpack.c.l.b16 %v322
    %v403 = vunpack.c.l.b16 %v323
    %v404 = vunpack.c.l.b16 %v324
    %v405 = vunpack.c.l.b16 %v325
    %v406 = vunpack.c.l.b16 %v326
    %v407 = vunpack.c.l.b16 %v327
    %v408 = vunpack.c.l.b16 %v328
    %v409 = vunpack.c.l.b16 %v329
    %v410 = vunpack.c.l.b16 %v330
    %v411 = vpack.c.b16 %v396, %v395
    %v412 = vpack.c.b16 %v398, %v397
    %v413 = vpack.c.b16 %v400, %v399
    %v414 = vpack.c.b16 %v402, %v401
    %v415 = vpack.c.b16 %v404, %v403
    %v416 = vpack.c.b16 %v406, %v405
    %v417 = vpack.c.b16 %v408, %v407
    %v418 = vpack.c.b16 %v410, %v409
    %v427 = vld [vmem:[%s5] sm:$0xff]
    %v428 = vld [vmem:[%s5 + $0x8] sm:$0xff]
    %v429 = vld [vmem:[%s5 + $0x10] sm:$0xff]
    %v430 = vld [vmem:[%s5 + $0x18] sm:$0xff]
    %v431 = vld [vmem:[%s5 + $0x20] sm:$0xff]
    %v432 = vld [vmem:[%s5 + $0x28] sm:$0xff]
    %v433 = vld [vmem:[%s5 + $0x30] sm:$0xff]
    %v434 = vld [vmem:[%s5 + $0x38] sm:$0xff]
    %v435 = vld [vmem:[%s5 + $0x40] sm:$0xff]
    %v436 = vld [vmem:[%s5 + $0x48] sm:$0xff]
    %v437 = vld [vmem:[%s5 + $0x50] sm:$0xff]
    %v438 = vld [vmem:[%s5 + $0x58] sm:$0xff]
    %v439 = vld [vmem:[%s5 + $0x60] sm:$0xff]
    %v440 = vld [vmem:[%s5 + $0x68] sm:$0xff]
    %v441 = vld [vmem:[%s5 + $0x70] sm:$0xff]
    %v442 = vld [vmem:[%s5 + $0x78] sm:$0xff]
    %v443 = vpack.c.bf16 %v428, %v427
    %v444 = vpack.c.bf16 %v430, %v429
    %v445 = vpack.c.bf16 %v432, %v431
    %v446 = vpack.c.bf16 %v434, %v433
    %v447 = vpack.c.bf16 %v436, %v435
    %v448 = vpack.c.bf16 %v438, %v437
    %v449 = vpack.c.bf16 %v440, %v439
    %v450 = vpack.c.bf16 %v442, %v441
    %v451 = vld [vmem:[%s6] sm:$0xff]
    %v452 = vld [vmem:[%s6 + $0x8] sm:$0xff]
    %v453 = vld [vmem:[%s6 + $0x10] sm:$0xff]
    %v454 = vld [vmem:[%s6 + $0x18] sm:$0xff]
    %v455 = vld [vmem:[%s6 + $0x20] sm:$0xff]
    %v456 = vld [vmem:[%s6 + $0x28] sm:$0xff]
    %v457 = vld [vmem:[%s6 + $0x30] sm:$0xff]
    %v458 = vld [vmem:[%s6 + $0x38] sm:$0xff]
    %v459 = vld [vmem:[%s6 + $0x40] sm:$0xff]
    %v460 = vld [vmem:[%s6 + $0x48] sm:$0xff]
    %v461 = vld [vmem:[%s6 + $0x50] sm:$0xff]
    %v462 = vld [vmem:[%s6 + $0x58] sm:$0xff]
    %v463 = vld [vmem:[%s6 + $0x60] sm:$0xff]
    %v464 = vld [vmem:[%s6 + $0x68] sm:$0xff]
    %v465 = vld [vmem:[%s6 + $0x70] sm:$0xff]
    %v466 = vld [vmem:[%s6 + $0x78] sm:$0xff]
    %468 = vset.pattern.permute.xlu0 0
    %469 = vperm.xlu0 %468, %v451
    %v470 = vpop.permute.xlu0 %469
    %473 = vset.pattern.permute.xlu0 0
    %474 = vperm.xlu0 %473, %v452
    %v475 = vpop.permute.xlu0 %474
    %478 = vset.pattern.permute.xlu0 0
    %479 = vperm.xlu0 %478, %v453
    %v480 = vpop.permute.xlu0 %479
    %483 = vset.pattern.permute.xlu0 0
    %484 = vperm.xlu0 %483, %v454
    %v485 = vpop.permute.xlu0 %484
    %488 = vset.pattern.permute.xlu0 0
    %489 = vperm.xlu0 %488, %v455
    %v490 = vpop.permute.xlu0 %489
    %493 = vset.pattern.permute.xlu0 0
    %494 = vperm.xlu0 %493, %v456
    %v495 = vpop.permute.xlu0 %494
    %498 = vset.pattern.permute.xlu0 0
    %499 = vperm.xlu0 %498, %v457
    %v500 = vpop.permute.xlu0 %499
    %503 = vset.pattern.permute.xlu0 0
    %504 = vperm.xlu0 %503, %v458
    %v505 = vpop.permute.xlu0 %504
    %508 = vset.pattern.permute.xlu0 0
    %509 = vperm.xlu0 %508, %v459
    %v510 = vpop.permute.xlu0 %509
    %513 = vset.pattern.permute.xlu0 0
    %514 = vperm.xlu0 %513, %v460
    %v515 = vpop.permute.xlu0 %514
    %518 = vset.pattern.permute.xlu0 0
    %519 = vperm.xlu0 %518, %v461
    %v520 = vpop.permute.xlu0 %519
    %523 = vset.pattern.permute.xlu0 0
    %524 = vperm.xlu0 %523, %v462
    %v525 = vpop.permute.xlu0 %524
    %528 = vset.pattern.permute.xlu0 0
    %529 = vperm.xlu0 %528, %v463
    %v530 = vpop.permute.xlu0 %529
    %533 = vset.pattern.permute.xlu0 0
    %534 = vperm.xlu0 %533, %v464
    %v535 = vpop.permute.xlu0 %534
    %538 = vset.pattern.permute.xlu0 0
    %539 = vperm.xlu0 %538, %v465
    %v540 = vpop.permute.xlu0 %539
    %543 = vset.pattern.permute.xlu0 0
    %544 = vperm.xlu0 %543, %v466
    %v545 = vpop.permute.xlu0 %544
    %547 = vmatpush.bf16.msra.mxu0 %v370
    %548 = vmatpush.bf16.msra.mxu0 %v369
    %549 = vmatpush.bf16.msra.mxu0 %v368
    %550 = vmatpush.bf16.msra.mxu0 %v367
    %551 = vmatpush.bf16.msra.mxu0 %v366
    %552 = vmatpush.bf16.msra.mxu0 %v365
    %553 = vmatpush.bf16.msra.mxu0 %v364
    %554 = vmatpush.bf16.msra.mxu0 %v363
    %555 = vmatmul.bf16.gmra.mxu0 %v443
    %v556 = vpop.f32.mrf.mxu0
    %v557 = vadd.f32 %v470, %v556
    %v558 = vpop.f32.mrf.mxu0
    %v559 = vadd.f32 %v475, %v558
    %560 = vmatmul.bf16.gmra.mxu0 %v444
    %v561 = vpop.f32.mrf.mxu0
    %v562 = vadd.f32 %v480, %v561
    %v563 = vpop.f32.mrf.mxu0
    %v564 = vadd.f32 %v485, %v563
    %565 = vmatmul.bf16.gmra.mxu0 %v445
    %v566 = vpop.f32.mrf.mxu0
    %v567 = vadd.f32 %v490, %v566
    %v568 = vpop.f32.mrf.mxu0
    %v569 = vadd.f32 %v495, %v568
    %570 = vmatmul.bf16.gmra.mxu0 %v446
    %v571 = vpop.f32.mrf.mxu0
    %v572 = vadd.f32 %v500, %v571
    %v573 = vpop.f32.mrf.mxu0
    %v574 = vadd.f32 %v505, %v573
    %575 = vmatmul.bf16.gmra.mxu0 %v447
    %v576 = vpop.f32.mrf.mxu0
    %v577 = vadd.f32 %v510, %v576
    %v578 = vpop.f32.mrf.mxu0
    %v579 = vadd.f32 %v515, %v578
    %580 = vmatmul.bf16.gmra.mxu0 %v448
    %v581 = vpop.f32.mrf.mxu0
    %v582 = vadd.f32 %v520, %v581
    %v583 = vpop.f32.mrf.mxu0
    %v584 = vadd.f32 %v525, %v583
    %585 = vmatmul.bf16.gmra.mxu0 %v449
    %v586 = vpop.f32.mrf.mxu0
    %v587 = vadd.f32 %v530, %v586
    %v588 = vpop.f32.mrf.mxu0
    %v589 = vadd.f32 %v535, %v588
    %590 = vmatmul.bf16.gmra.mxu0 %v450
    %v591 = vpop.f32.mrf.mxu0
    %v592 = vadd.f32 %v540, %v591
    %v593 = vpop.f32.mrf.mxu0
    %v594 = vadd.f32 %v545, %v593
    %595 = vdwg.mxu0
    %596 = vmatpush.bf16.msra.mxu0 %v418
    %597 = vmatpush.bf16.msra.mxu0 %v417
    %598 = vmatpush.bf16.msra.mxu0 %v416
    %599 = vmatpush.bf16.msra.mxu0 %v415
    %600 = vmatpush.bf16.msra.mxu0 %v414
    %601 = vmatpush.bf16.msra.mxu0 %v413
    %602 = vmatpush.bf16.msra.mxu0 %v412
    %603 = vmatpush.bf16.msra.mxu0 %v411
    %604 = vmatmul.bf16.gmra.mxu0 %v443
    %v605 = vpop.f32.mrf.mxu0
    %v606 = vadd.f32 %v470, %v605
    %v607 = vpop.f32.mrf.mxu0
    %v608 = vadd.f32 %v475, %v607
    %609 = vmatmul.bf16.gmra.mxu0 %v444
    %v610 = vpop.f32.mrf.mxu0
    %v611 = vadd.f32 %v480, %v610
    %v612 = vpop.f32.mrf.mxu0
    %v613 = vadd.f32 %v485, %v612
    %614 = vmatmul.bf16.gmra.mxu0 %v445
    %v615 = vpop.f32.mrf.mxu0
    %v616 = vadd.f32 %v490, %v615
    %v617 = vpop.f32.mrf.mxu0
    %v618 = vadd.f32 %v495, %v617
    %619 = vmatmul.bf16.gmra.mxu0 %v446
    %v620 = vpop.f32.mrf.mxu0
    %v621 = vadd.f32 %v500, %v620
    %v622 = vpop.f32.mrf.mxu0
    %v623 = vadd.f32 %v505, %v622
    %624 = vmatmul.bf16.gmra.mxu0 %v447
    %v625 = vpop.f32.mrf.mxu0
    %v626 = vadd.f32 %v510, %v625
    %v627 = vpop.f32.mrf.mxu0
    %v628 = vadd.f32 %v515, %v627
    %629 = vmatmul.bf16.gmra.mxu0 %v448
    %v630 = vpop.f32.mrf.mxu0
    %v631 = vadd.f32 %v520, %v630
    %v632 = vpop.f32.mrf.mxu0
    %v633 = vadd.f32 %v525, %v632
    %634 = vmatmul.bf16.gmra.mxu0 %v449
    %v635 = vpop.f32.mrf.mxu0
    %v636 = vadd.f32 %v530, %v635
    %v637 = vpop.f32.mrf.mxu0
    %v638 = vadd.f32 %v535, %v637
    %639 = vmatmul.bf16.gmra.mxu0 %v450
    %v640 = vpop.f32.mrf.mxu0
    %v641 = vadd.f32 %v540, %v640
    %v642 = vpop.f32.mrf.mxu0
    %v643 = vadd.f32 %v545, %v642
    %644 = vdwg.mxu0
    %v645 = vpack.c.bf16 %v608, %v606
    %v646 = vpack.c.bf16 %v613, %v611
    %v647 = vpack.c.bf16 %v618, %v616
    %v648 = vpack.c.bf16 %v623, %v621
    %v649 = vpack.c.bf16 %v628, %v626
    %v650 = vpack.c.bf16 %v633, %v631
    %v651 = vpack.c.bf16 %v638, %v636
    %v652 = vpack.c.bf16 %v643, %v641
    %v653 = vld [vmem:[%s2] sm:$0x1]
    %v655 = vperm.slane %v653, 0
    %v658 = vsel %vm169, %v259, 0
    %v661 = vsel %vm169, %v260, 0
    %v664 = vsel %vm169, %v261, 0
    %v667 = vsel %vm169, %v262, 0
    %v670 = vsel %vm169, %v263, 0
    %v673 = vsel %vm169, %v264, 0
    %v676 = vsel %vm169, %v265, 0
    %v679 = vsel %vm169, %v266, 0
    %v682 = vsel %vm169, %v645, 0
    %v685 = vsel %vm169, %v646, 0
    %v688 = vsel %vm169, %v647, 0
    %v691 = vsel %vm169, %v648, 0
    %v694 = vsel %vm169, %v649, 0
    %v697 = vsel %vm169, %v650, 0
    %v700 = vsel %vm169, %v651, 0
    %v703 = vsel %vm169, %v652, 0
    %705 = vmatpush.bf16.xpose.msra.mxu0 %v703
    %706 = vmatpush.bf16.xpose.msra.mxu0 %v700
    %707 = vmatpush.bf16.xpose.msra.mxu0 %v697
    %708 = vmatpush.bf16.xpose.msra.mxu0 %v694
    %709 = vmatpush.bf16.xpose.msra.mxu0 %v691
    %710 = vmatpush.bf16.xpose.msra.mxu0 %v688
    %711 = vmatpush.bf16.xpose.msra.mxu0 %v685
    %712 = vmatpush.bf16.xpose.msra.mxu0 %v682
    %713 = vmatmul.bf16.gmra.mxu0 %v658
    %v714 = vpop.f32.mrf.mxu0
    %v715 = vadd.f32 %v655, %v714
    %v716 = vpop.f32.mrf.mxu0
    %v717 = vadd.f32 %v655, %v716
    %718 = vmatmul.bf16.gmra.mxu0 %v661
    %v719 = vpop.f32.mrf.mxu0
    %v720 = vadd.f32 %v655, %v719
    %v721 = vpop.f32.mrf.mxu0
    %v722 = vadd.f32 %v655, %v721
    %723 = vmatmul.bf16.gmra.mxu0 %v664
    %v724 = vpop.f32.mrf.mxu0
    %v725 = vadd.f32 %v655, %v724
    %v726 = vpop.f32.mrf.mxu0
    %v727 = vadd.f32 %v655, %v726
    %728 = vmatmul.bf16.gmra.mxu0 %v667
    %v729 = vpop.f32.mrf.mxu0
    %v730 = vadd.f32 %v655, %v729
    %v731 = vpop.f32.mrf.mxu0
    %v732 = vadd.f32 %v655, %v731
    %733 = vmatmul.bf16.gmra.mxu0 %v670
    %v734 = vpop.f32.mrf.mxu0
    %v735 = vadd.f32 %v655, %v734
    %v736 = vpop.f32.mrf.mxu0
    %v737 = vadd.f32 %v655, %v736
    %738 = vmatmul.bf16.gmra.mxu0 %v673
    %v739 = vpop.f32.mrf.mxu0
    %v740 = vadd.f32 %v655, %v739
    %v741 = vpop.f32.mrf.mxu0
    %v742 = vadd.f32 %v655, %v741
    %743 = vmatmul.bf16.gmra.mxu0 %v676
    %v744 = vpop.f32.mrf.mxu0
    %v745 = vadd.f32 %v655, %v744
    %v746 = vpop.f32.mrf.mxu0
    %v747 = vadd.f32 %v655, %v746
    %748 = vmatmul.bf16.gmra.mxu0 %v679
    %v749 = vpop.f32.mrf.mxu0
    %v750 = vadd.f32 %v655, %v749
    %v751 = vpop.f32.mrf.mxu0
    %v752 = vadd.f32 %v655, %v751
    %753 = vdwg.mxu0
    %754 = vmax.xlane.f32.xlu0 %v715
    %v755 = vpop.xlane.xlu0 %754
    %756 = vmax.xlane.f32.xlu0 %v717
    %v757 = vpop.xlane.xlu0 %756
    %758 = vmax.xlane.f32.xlu0 %v720
    %v759 = vpop.xlane.xlu0 %758
    %760 = vmax.xlane.f32.xlu0 %v722
    %v761 = vpop.xlane.xlu0 %760
    %762 = vmax.xlane.f32.xlu0 %v725
    %v763 = vpop.xlane.xlu0 %762
    %764 = vmax.xlane.f32.xlu0 %v727
    %v765 = vpop.xlane.xlu0 %764
    %766 = vmax.xlane.f32.xlu0 %v730
    %v767 = vpop.xlane.xlu0 %766
    %768 = vmax.xlane.f32.xlu0 %v732
    %v769 = vpop.xlane.xlu0 %768
    %770 = vmax.xlane.f32.xlu0 %v735
    %v771 = vpop.xlane.xlu0 %770
    %772 = vmax.xlane.f32.xlu0 %v737
    %v773 = vpop.xlane.xlu0 %772
    %774 = vmax.xlane.f32.xlu0 %v740
    %v775 = vpop.xlane.xlu0 %774
    %776 = vmax.xlane.f32.xlu0 %v742
    %v777 = vpop.xlane.xlu0 %776
    %778 = vmax.xlane.f32.xlu0 %v745
    %v779 = vpop.xlane.xlu0 %778
    %780 = vmax.xlane.f32.xlu0 %v747
    %v781 = vpop.xlane.xlu0 %780
    %782 = vmax.xlane.f32.xlu0 %v750
    %v783 = vpop.xlane.xlu0 %782
    %784 = vmax.xlane.f32.xlu0 %v752
    %v785 = vpop.xlane.xlu0 %784
    %v786 = vsub.f32 %v715, %v755
    %v787 = vsub.f32 %v717, %v757
    %v788 = vsub.f32 %v720, %v759
    %v789 = vsub.f32 %v722, %v761
    %v790 = vsub.f32 %v725, %v763
    %v791 = vsub.f32 %v727, %v765
    %v792 = vsub.f32 %v730, %v767
    %v793 = vsub.f32 %v732, %v769
    %v794 = vsub.f32 %v735, %v771
    %v795 = vsub.f32 %v737, %v773
    %v796 = vsub.f32 %v740, %v775
    %v797 = vsub.f32 %v742, %v777
    %v798 = vsub.f32 %v745, %v779
    %v799 = vsub.f32 %v747, %v781
    %v800 = vsub.f32 %v750, %v783
    %v801 = vsub.f32 %v752, %v785
    %v802 = vmul.f32 %v786, 1.442695
    %v803 = vpow.pop %v802
    %v804 = vmul.f32 %v787, 1.442695
    %v805 = vpow.pop %v804
    %v806 = vmul.f32 %v788, 1.442695
    %v807 = vpow.pop %v806
    %v808 = vmul.f32 %v789, 1.442695
    %v809 = vpow.pop %v808
    %v810 = vmul.f32 %v790, 1.442695
    %v811 = vpow.pop %v810
    %v812 = vmul.f32 %v791, 1.442695
    %v813 = vpow.pop %v812
    %v814 = vmul.f32 %v792, 1.442695
    %v815 = vpow.pop %v814
    %v816 = vmul.f32 %v793, 1.442695
    %v817 = vpow.pop %v816
    %v818 = vmul.f32 %v794, 1.442695
    %v819 = vpow.pop %v818
    %v820 = vmul.f32 %v795, 1.442695
    %v821 = vpow.pop %v820
    %v822 = vmul.f32 %v796, 1.442695
    %v823 = vpow.pop %v822
    %v824 = vmul.f32 %v797, 1.442695
    %v825 = vpow.pop %v824
    %v826 = vmul.f32 %v798, 1.442695
    %v827 = vpow.pop %v826
    %v828 = vmul.f32 %v799, 1.442695
    %v829 = vpow.pop %v828
    %v830 = vmul.f32 %v800, 1.442695
    %v831 = vpow.pop %v830
    %v832 = vmul.f32 %v801, 1.442695
    %v833 = vpow.pop %v832
    %834 = vadd.xlane.f32.xlu0 %v803
    %v835 = vpop.xlane.xlu0 %834
    %836 = vadd.xlane.f32.xlu0 %v805
    %v837 = vpop.xlane.xlu0 %836
    %838 = vadd.xlane.f32.xlu0 %v807
    %v839 = vpop.xlane.xlu0 %838
    %840 = vadd.xlane.f32.xlu0 %v809
    %v841 = vpop.xlane.xlu0 %840
    %842 = vadd.xlane.f32.xlu0 %v811
    %v843 = vpop.xlane.xlu0 %842
    %844 = vadd.xlane.f32.xlu0 %v813
    %v845 = vpop.xlane.xlu0 %844
    %846 = vadd.xlane.f32.xlu0 %v815
    %v847 = vpop.xlane.xlu0 %846
    %848 = vadd.xlane.f32.xlu0 %v817
    %v849 = vpop.xlane.xlu0 %848
    %850 = vadd.xlane.f32.xlu0 %v819
    %v851 = vpop.xlane.xlu0 %850
    %852 = vadd.xlane.f32.xlu0 %v821
    %v853 = vpop.xlane.xlu0 %852
    %854 = vadd.xlane.f32.xlu0 %v823
    %v855 = vpop.xlane.xlu0 %854
    %856 = vadd.xlane.f32.xlu0 %v825
    %v857 = vpop.xlane.xlu0 %856
    %858 = vadd.xlane.f32.xlu0 %v827
    %v859 = vpop.xlane.xlu0 %858
    %860 = vadd.xlane.f32.xlu0 %v829
    %v861 = vpop.xlane.xlu0 %860
    %862 = vadd.xlane.f32.xlu0 %v831
    %v863 = vpop.xlane.xlu0 %862
    %864 = vadd.xlane.f32.xlu0 %v833
    %v865 = vpop.xlane.xlu0 %864
    %v866 = vrcp.pop %v835
    %v867 = vrcp.pop %v837
    %v868 = vrcp.pop %v839
    %v869 = vrcp.pop %v841
    %v870 = vrcp.pop %v843
    %v871 = vrcp.pop %v845
    %v872 = vrcp.pop %v847
    %v873 = vrcp.pop %v849
    %v874 = vrcp.pop %v851
    %v875 = vrcp.pop %v853
    %v876 = vrcp.pop %v855
    %v877 = vrcp.pop %v857
    %v878 = vrcp.pop %v859
    %v879 = vrcp.pop %v861
    %v880 = vrcp.pop %v863
    %v881 = vrcp.pop %v865
    %v882 = vmul.f32 %v803, %v866
    %v883 = vmul.f32 %v805, %v867
    %v884 = vmul.f32 %v807, %v868
    %v885 = vmul.f32 %v809, %v869
    %v886 = vmul.f32 %v811, %v870
    %v887 = vmul.f32 %v813, %v871
    %v888 = vmul.f32 %v815, %v872
    %v889 = vmul.f32 %v817, %v873
    %v890 = vmul.f32 %v819, %v874
    %v891 = vmul.f32 %v821, %v875
    %v892 = vmul.f32 %v823, %v876
    %v893 = vmul.f32 %v825, %v877
    %v894 = vmul.f32 %v827, %v878
    %v895 = vmul.f32 %v829, %v879
    %v896 = vmul.f32 %v831, %v880
    %v897 = vmul.f32 %v833, %v881
    %898 = vst [vmem:[#allocation4] sm:$0xff] %v882
    %899 = vst [vmem:[#allocation4 + $0x8] sm:$0xff] %v883
    %900 = vst [vmem:[#allocation4 + $0x10] sm:$0xff] %v884
    %901 = vst [vmem:[#allocation4 + $0x18] sm:$0xff] %v885
    %902 = vst [vmem:[#allocation4 + $0x20] sm:$0xff] %v886
    %903 = vst [vmem:[#allocation4 + $0x28] sm:$0xff] %v887
    %904 = vst [vmem:[#allocation4 + $0x30] sm:$0xff] %v888
    %905 = vst [vmem:[#allocation4 + $0x38] sm:$0xff] %v889
    %906 = vst [vmem:[#allocation4 + $0x40] sm:$0xff] %v890
    %907 = vst [vmem:[#allocation4 + $0x48] sm:$0xff] %v891
    %908 = vst [vmem:[#allocation4 + $0x50] sm:$0xff] %v892
    %909 = vst [vmem:[#allocation4 + $0x58] sm:$0xff] %v893
    %910 = vst [vmem:[#allocation4 + $0x60] sm:$0xff] %v894
    %911 = vst [vmem:[#allocation4 + $0x68] sm:$0xff] %v895
    %912 = vst [vmem:[#allocation4 + $0x70] sm:$0xff] %v896
    %913 = vst [vmem:[#allocation4 + $0x78] sm:$0xff] %v897
    %v914 = vpack.c.bf16 %v883, %v882
    %v915 = vpack.c.bf16 %v885, %v884
    %v916 = vpack.c.bf16 %v887, %v886
    %v917 = vpack.c.bf16 %v889, %v888
    %v918 = vpack.c.bf16 %v891, %v890
    %v919 = vpack.c.bf16 %v893, %v892
    %v920 = vpack.c.bf16 %v895, %v894
    %v921 = vpack.c.bf16 %v897, %v896
    %v922 = vld [vmem:[%s7] sm:$0xff]
    %v923 = vld [vmem:[%s7 + $0x8] sm:$0xff]
    %v924 = vld [vmem:[%s7 + $0x10] sm:$0xff]
    %v925 = vld [vmem:[%s7 + $0x18] sm:$0xff]
    %v926 = vld [vmem:[%s7 + $0x20] sm:$0xff]
    %v927 = vld [vmem:[%s7 + $0x28] sm:$0xff]
    %v928 = vld [vmem:[%s7 + $0x30] sm:$0xff]
    %v929 = vld [vmem:[%s7 + $0x38] sm:$0xff]
    %v930 = vpack.c.bf16 %v923, %v922
    %v931 = vpack.c.bf16 %v925, %v924
    %v932 = vpack.c.bf16 %v927, %v926
    %v933 = vpack.c.bf16 %v929, %v928
    %v934 = vpack.c.bf16 %v559, %v557
    %v935 = vpack.c.bf16 %v564, %v562
    %v936 = vpack.c.bf16 %v569, %v567
    %v937 = vpack.c.bf16 %v574, %v572
    %v938 = vpack.c.bf16 %v579, %v577
    %v939 = vpack.c.bf16 %v584, %v582
    %v940 = vpack.c.bf16 %v589, %v587
    %v941 = vpack.c.bf16 %v594, %v592
    %942 = vmatpush.bf16.msra.mxu0 %v941
    %943 = vmatpush.bf16.msra.mxu0 %v940
    %944 = vmatpush.bf16.msra.mxu0 %v939
    %945 = vmatpush.bf16.msra.mxu0 %v938
    %946 = vmatpush.bf16.msra.mxu0 %v937
    %947 = vmatpush.bf16.msra.mxu0 %v936
    %948 = vmatpush.bf16.msra.mxu0 %v935
    %949 = vmatpush.bf16.msra.mxu0 %v934
    %950 = vmatmul.bf16.gmra.mxu0 %v914
    %v951 = vpop.f32.mrf.mxu0
    %v952 = vadd.f32 0.0, %v951
    %v953 = vpop.f32.mrf.mxu0
    %v954 = vadd.f32 0.0, %v953
    %955 = vmatmul.bf16.gmra.mxu0 %v915
    %v956 = vpop.f32.mrf.mxu0
    %v957 = vadd.f32 0.0, %v956
    %v958 = vpop.f32.mrf.mxu0
    %v959 = vadd.f32 0.0, %v958
    %960 = vmatmul.bf16.gmra.mxu0 %v916
    %v961 = vpop.f32.mrf.mxu0
    %v962 = vadd.f32 0.0, %v961
    %v963 = vpop.f32.mrf.mxu0
    %v964 = vadd.f32 0.0, %v963
    %965 = vmatmul.bf16.gmra.mxu0 %v917
    %v966 = vpop.f32.mrf.mxu0
    %v967 = vadd.f32 0.0, %v966
    %v968 = vpop.f32.mrf.mxu0
    %v969 = vadd.f32 0.0, %v968
    %970 = vmatmul.bf16.gmra.mxu0 %v918
    %v971 = vpop.f32.mrf.mxu0
    %v972 = vadd.f32 0.0, %v971
    %v973 = vpop.f32.mrf.mxu0
    %v974 = vadd.f32 0.0, %v973
    %975 = vmatmul.bf16.gmra.mxu0 %v919
    %v976 = vpop.f32.mrf.mxu0
    %v977 = vadd.f32 0.0, %v976
    %v978 = vpop.f32.mrf.mxu0
    %v979 = vadd.f32 0.0, %v978
    %980 = vmatmul.bf16.gmra.mxu0 %v920
    %v981 = vpop.f32.mrf.mxu0
    %v982 = vadd.f32 0.0, %v981
    %v983 = vpop.f32.mrf.mxu0
    %v984 = vadd.f32 0.0, %v983
    %985 = vmatmul.bf16.gmra.mxu0 %v921
    %v986 = vpop.f32.mrf.mxu0
    %v987 = vadd.f32 0.0, %v986
    %v988 = vpop.f32.mrf.mxu0
    %v989 = vadd.f32 0.0, %v988
    %990 = vdwg.mxu0
    %v991 = vpack.c.bf16 %v954, %v952
    %v992 = vpack.c.bf16 %v959, %v957
    %v993 = vpack.c.bf16 %v964, %v962
    %v994 = vpack.c.bf16 %v969, %v967
    %v995 = vpack.c.bf16 %v974, %v972
    %v996 = vpack.c.bf16 %v979, %v977
    %v997 = vpack.c.bf16 %v984, %v982
    %v998 = vpack.c.bf16 %v989, %v987
    %v999 = vld [vmem:[%s8] sm:$0xff]
    %v1000 = vld [vmem:[%s8 + $0x8] sm:$0xff]
    %v1001 = vld [vmem:[%s8 + $0x10] sm:$0xff]
    %v1002 = vld [vmem:[%s8 + $0x18] sm:$0xff]
    %v1003 = vld [vmem:[%s8 + $0x20] sm:$0xff]
    %v1004 = vld [vmem:[%s8 + $0x28] sm:$0xff]
    %v1005 = vld [vmem:[%s8 + $0x30] sm:$0xff]
    %v1006 = vld [vmem:[%s8 + $0x38] sm:$0xff]
    %1008 = vset.pattern.permute.xlu0 0
    %1009 = vperm.xlu0 %1008, %v999
    %v1010 = vpop.permute.xlu0 %1009
    %1013 = vset.pattern.permute.xlu0 0
    %1014 = vperm.xlu0 %1013, %v1000
    %v1015 = vpop.permute.xlu0 %1014
    %1018 = vset.pattern.permute.xlu0 0
    %1019 = vperm.xlu0 %1018, %v1001
    %v1020 = vpop.permute.xlu0 %1019
    %1023 = vset.pattern.permute.xlu0 0
    %1024 = vperm.xlu0 %1023, %v1002
    %v1025 = vpop.permute.xlu0 %1024
    %1028 = vset.pattern.permute.xlu0 0
    %1029 = vperm.xlu0 %1028, %v1003
    %v1030 = vpop.permute.xlu0 %1029
    %1033 = vset.pattern.permute.xlu0 0
    %1034 = vperm.xlu0 %1033, %v1004
    %v1035 = vpop.permute.xlu0 %1034
    %1038 = vset.pattern.permute.xlu0 0
    %1039 = vperm.xlu0 %1038, %v1005
    %v1040 = vpop.permute.xlu0 %1039
    %1043 = vset.pattern.permute.xlu0 0
    %1044 = vperm.xlu0 %1043, %v1006
    %v1045 = vpop.permute.xlu0 %1044
    %1047 = vmatpush.bf16.msra.mxu0 %v998
    %1048 = vmatpush.bf16.msra.mxu0 %v997
    %1049 = vmatpush.bf16.msra.mxu0 %v996
    %1050 = vmatpush.bf16.msra.mxu0 %v995
    %1051 = vmatpush.bf16.msra.mxu0 %v994
    %1052 = vmatpush.bf16.msra.mxu0 %v993
    %1053 = vmatpush.bf16.msra.mxu0 %v992
    %1054 = vmatpush.bf16.msra.mxu0 %v991
    %1055 = vmatmul.bf16.gmra.mxu0 %v930
    %v1056 = vpop.f32.mrf.mxu0
    %v1057 = vadd.f32 %v1010, %v1056
    %v1058 = vpop.f32.mrf.mxu0
    %v1059 = vadd.f32 %v1015, %v1058
    %1060 = vmatmul.bf16.gmra.mxu0 %v931
    %v1061 = vpop.f32.mrf.mxu0
    %v1062 = vadd.f32 %v1020, %v1061
    %v1063 = vpop.f32.mrf.mxu0
    %v1064 = vadd.f32 %v1025, %v1063
    %1065 = vmatmul.bf16.gmra.mxu0 %v932
    %v1066 = vpop.f32.mrf.mxu0
    %v1067 = vadd.f32 %v1030, %v1066
    %v1068 = vpop.f32.mrf.mxu0
    %v1069 = vadd.f32 %v1035, %v1068
    %1070 = vmatmul.bf16.gmra.mxu0 %v933
    %v1071 = vpop.f32.mrf.mxu0
    %v1072 = vadd.f32 %v1040, %v1071
    %v1073 = vpop.f32.mrf.mxu0
    %v1074 = vadd.f32 %v1045, %v1073
    %1075 = vdwg.mxu0
    %1076 = vst [vmem:[#allocation2] sm:$0xff] %v1057
    %1077 = vst [vmem:[#allocation2 + $0x8] sm:$0xff] %v1059
    %1078 = vst [vmem:[#allocation2 + $0x10] sm:$0xff] %v1062
    %1079 = vst [vmem:[#allocation2 + $0x18] sm:$0xff] %v1064
    %1080 = vst [vmem:[#allocation2 + $0x20] sm:$0xff] %v1067
    %1081 = vst [vmem:[#allocation2 + $0x28] sm:$0xff] %v1069
    %1082 = vst [vmem:[#allocation2 + $0x30] sm:$0xff] %v1072
    %1083 = vst [vmem:[#allocation2 + $0x38] sm:$0xff] %v1074
    // Predicated region
    $region38: #{tpu_custom_call.1} parent=1 // pred_check
      _
    $region39: #{tpu_custom_call.1} parent=1 // pred_check_branch
      %1085 = sbr.rel (0) target = $region41
    $region40: #{tpu_custom_call.1} parent=1 // pred_region
      %1087 = vsyncadd [#allocation3], 0
      %s1088 = sshll.u32 [#allocation2], 4
      %s1089 = int_to_ptr.vmem [resolvable:$true] %s1088
      %s1090 = sshll.u32 %s9, 4
      %s1091 = int_to_ptr.hbm [resolvable:$true] %s1090
      %1096 = dma.vmem_to_hbm [thread:$0]  %s1089, 1024, %s1091, [#allocation3], 128, 128, 8
    $region41: #{tpu_custom_call.1} parent=1 // pred_fallthru
      _
    // Predicated region
    $region42: #{tpu_custom_call.1} parent=1 // pred_check
      _
    $region43: #{tpu_custom_call.1} parent=1 // pred_check_branch
      %1098 = sbr.rel (0) target = $region45
    $region44: #{tpu_custom_call.1} parent=1 // pred_region
      %1100 = vsyncadd [#allocation5], 0
      %s1101 = sshll.u32 [#allocation4], 4
      %s1102 = int_to_ptr.vmem [resolvable:$true] %s1101
      %s1103 = sshll.u32 %s10, 4
      %s1104 = int_to_ptr.hbm [resolvable:$true] %s1103
      %1109 = dma.vmem_to_hbm [thread:$0]  %s1102, 2048, %s1104, [#allocation5], 128, 128, 8
    $region45: #{tpu_custom_call.1} parent=1 // pred_fallthru
      _
    // Predicated region
    $region46: #{tpu_custom_call.1} parent=1 // pred_check
      _
    $region47: #{tpu_custom_call.1} parent=1 // pred_check_branch
      %1111 = sbr.rel (0) target = $region49
    $region48: #{tpu_custom_call.1} parent=1 // pred_region
      %1113 = dma.done [#allocation3], 1024
    $region49: #{tpu_custom_call.1} parent=1 // pred_fallthru
      _
    // Predicated region
    $region50: #{tpu_custom_call.1} parent=1 // pred_check
      _
    $region51: #{tpu_custom_call.1} parent=1 // pred_check_branch
      %1115 = sbr.rel (0) target = $region53
    $region52: #{tpu_custom_call.1} parent=1 // pred_region
      %1117 = dma.done [#allocation5], 2048
    $region53: #{tpu_custom_call.1} parent=1 // pred_fallthru
      _
    %1118 = vsyncpa [#allocation3], 1
    %1119 = vsyncpa [#allocation5], 1

</llo_original>
